<compile_context>
chip_gen: v7x
topology: tpu7x:2x2x1
jax: 0.10.0
libtpu: 0.0.40
codegen_flags: <defaults>
</compile_context>

<pallas_src>
import jax
import jax.numpy as jnp
from jax.experimental import pallas as pl
from jax.experimental.pallas import tpu as pltpu


# ---------------------------------------------------------------------------
# Kernels
# ---------------------------------------------------------------------------
def _extra_emb_flat_kernel(msa_ref, seqb_ref, w_ref, out_ref):
    # msa_ref : (1, tn*L, d_init)  flattened (N, L) rows for this tile
    # seqb_ref: (1, L, d_msa)      per-batch seq emb + bias (VMEM-resident)
    # w_ref   : (d_init, d_msa)    grid-invariant weight
    # out_ref : (1, tn*L, d_msa)   flat, lane-dense store slab
    tn_l = out_ref.shape[1]
    L, d_msa = seqb_ref.shape[1], seqb_ref.shape[2]
    tn = tn_l // L
    # One large MXU matmul per tile, f32 accumulation.
    y = jnp.dot(msa_ref[0], w_ref[...], preferred_element_type=jnp.float32)
    # L % 8 == 0 -> both reshapes are sublane-trivial; broadcast-add the resident
    # per-batch seq embedding over the tn axis, then store flat.
    y = (y.reshape(tn, L, d_msa) + seqb_ref[...]).reshape(tn_l, d_msa)
    out_ref[0] = y.astype(out_ref.dtype)


def _extra_emb_3d_kernel(msa_ref, seqb_ref, w_ref, out_ref):
    # Fallback when L % 8 != 0: avoid sublane-merging reshapes and rank-3 dots.
    # msa_ref: (1, tn, L, d_init); out_ref: (1, tn, L, d_msa); tn is small (<=8).
    tn = out_ref.shape[1]
    seqb = seqb_ref[0]                      # (L, d_msa), f32
    for n in range(tn):                     # static unroll, 2-D MXU dots only
        y = jnp.dot(msa_ref[0, n], w_ref[...], preferred_element_type=jnp.float32)
        out_ref[0, n] = (y + seqb).astype(out_ref.dtype)


# ---------------------------------------------------------------------------
# Chip-aware VMEM budgeting and N-tiling
# ---------------------------------------------------------------------------
def _round_up(x, m):
    return -(-x // m) * m


def _vmem_params():
    """Returns (vmem_limit_bytes, tile_budget_bytes) derived from the chip."""
    mib = 1024 * 1024
    try:
        cap = int(pltpu.get_tpu_info().vmem_capacity_bytes)
    except Exception:
        cap = 64 * mib  # conservative fallback: v7x per-TensorCore VMEM
    if cap <= 64 * mib:
        # v7x-class: 64 MiB physical per TC -> leave ample headroom.
        return 48 * mib, 22 * mib
    # v5e / v6e: 128 MiB physical VMEM -> bigger tiles, fewer grid steps.
    return min(int(0.8 * cap), 104 * mib), min(int(0.6 * cap), 76 * mib)


def _largest_divisor_leq(n, cap):
    cap = max(1, min(int(cap), n))
    for t in range(cap, 0, -1):
        if n % t == 0:
            return t
    return 1


def _pick_tile_n(B, N, L, d_init, d_msa, in_itemsize, out_itemsize, tile_budget):
    """Largest tn such that:
      * the double-buffered (msa-in + out) tile plus resident blocks and a
        ~1 MiB internal-scratch margin fit `tile_budget`,
      * tn divides N (no padded partial tile),
      * B * (N // tn) >= 2 when possible (both v7x TensorCores get work)."""
    lane = lambda d: _round_up(d, 128)
    sub = lambda d: _round_up(d, 8)
    # Resident / grid-invariant blocks (Pallas double-buffers them by default).
    resident = 2 * sub(L) * lane(d_msa) * 4            # seq_emb block (f32)
    resident += 2 * sub(d_init) * lane(d_msa) * 4      # weight block (f32)
    resident += 1024 * 1024                            # Mosaic internal scratch margin
    budget = max(tile_budget - resident, 0)
    per_row = 2 * L * (lane(d_init) * in_itemsize + lane(d_msa) * out_itemsize)
    tn = max(1, budget // per_row)
    tn = min(int(tn), N)
    if B == 1 and N > 1:
        tn = min(tn, pl.cdiv(N, 2))   # guarantee >= 2 grid points for megacore
    return _largest_divisor_leq(N, tn)


# ---------------------------------------------------------------------------
# Wrapper
# ---------------------------------------------------------------------------
def extra_emb_forward(msa, seq, w, b, wq, *, out_dtype=None):
    """Forward pass of Extra_emb (eval mode: dropout = identity; `idx` unused).

    msa: (B, N, L, d_init); seq: (B, L, n_tok) one-hot (or soft) float.
    w:   (d_init, d_msa) Linear weight (transposed vs torch); b: (d_msa,);
    wq:  (n_tok, d_msa) embedding table.
    out_dtype: optional narrower output dtype (e.g. jnp.bfloat16) to halve the
      dominant HBM write stream; defaults to msa.dtype (unchanged semantics).
    Returns (B, N, L, d_msa)."""
    B, N, L, d_init = msa.shape
    d_msa = w.shape[-1]
    out_dtype = msa.dtype if out_dtype is None else jnp.dtype(out_dtype)

    # Per-batch sequence embedding with the Linear bias folded in.  This is a
    # tiny (L, n_tok) x (n_tok, d_msa) matmul: a separate pallas_call would be
    # pure launch overhead, so it is computed here and becomes a per-batch
    # VMEM-resident block inside the main kernel.
    seq_emb = (jnp.einsum("blt,te->ble", seq.astype(jnp.float32),
                          wq.astype(jnp.float32))
               + b.astype(jnp.float32)[None, None, :])

    vmem_limit, tile_budget = _vmem_params()
    tn = _pick_tile_n(B, N, L, d_init, d_msa, msa.dtype.itemsize,
                      out_dtype.itemsize, tile_budget)
    if L % 8 != 0:
        # Fallback kernel statically unrolls over tn -> keep it small.
        tn = _largest_divisor_leq(N, min(tn, 8))
    n_tiles = N // tn

    seq_spec = pl.BlockSpec((1, L, d_msa), lambda bi, ni: (bi, 0, 0))  # resident per b
    w_spec = pl.BlockSpec((d_init, d_msa), lambda bi, ni: (0, 0))      # grid-invariant
    cparams = pltpu.CompilerParams(
        # Both grid axes are independent -> both v7x TensorCores get work even
        # when B == 1 (tn selection guarantees >= 2 grid points when possible).
        dimension_semantics=("parallel", "parallel"),
        vmem_limit_bytes=vmem_limit,
    )

    if L % 8 == 0:
        # Flatten (N, L) -> one M axis: one big sublane-aligned MXU dot per tile
        # and one flat, lane-dense 2-D output store slab.
        msa_in = msa.reshape(B, N * L, d_init)
        msa_spec = pl.BlockSpec((1, tn * L, d_init), lambda bi, ni: (bi, ni, 0))
        out_spec = pl.BlockSpec((1, tn * L, d_msa), lambda bi, ni: (bi, ni, 0))
        out_shape = jax.ShapeDtypeStruct((B, N * L, d_msa), out_dtype)
        kernel = _extra_emb_flat_kernel
    else:
        msa_in = msa
        msa_spec = pl.BlockSpec((1, tn, L, d_init), lambda bi, ni: (bi, ni, 0, 0))
        out_spec = pl.BlockSpec((1, tn, L, d_msa), lambda bi, ni: (bi, ni, 0, 0))
        out_shape = jax.ShapeDtypeStruct((B, N, L, d_msa), out_dtype)
        kernel = _extra_emb_3d_kernel

    out = pl.pallas_call(
        kernel,
        out_shape=out_shape,
        grid_spec=pltpu.PrefetchScalarGridSpec(
            num_scalar_prefetch=0,
            grid=(B, n_tiles),   # ni iterates fastest -> seq_emb stays resident per b
            in_specs=[msa_spec, seq_spec, w_spec],
            out_specs=out_spec,
        ),
        compiler_params=cparams,
    )(msa_in, seq_emb, w)

    return out.reshape(B, N, L, d_msa)


# ---------------------------------------------------------------------------
# Reference + self-test
# ---------------------------------------------------------------------------
def _reference(msa, seq, w, b, wq):
    msa_emb = jnp.einsum("bnld,de->bnle", msa, w) + b
    seq_emb = jnp.einsum("blt,te->ble", seq, wq)
    return msa_emb + seq_emb[:, None, :, :]


def _make_inputs(key, B, N, L, d_init, d_msa, n_tok):
    k_msa, k_seq, k_w, k_b, k_wq = jax.random.split(key, 5)
    msa = jax.random.normal(k_msa, (B, N, L, d_init), dtype=jnp.float32)
    seq_ids = jax.random.randint(k_seq, (B, L), 0, n_tok)
    seq = jax.nn.one_hot(seq_ids, n_tok, dtype=jnp.float32)
    w = jax.random.normal(k_w, (d_init, d_msa), dtype=jnp.float32) * (1.0 / d_init) ** 0.5
    b = jax.random.normal(k_b, (d_msa,), dtype=jnp.float32) * 0.1
    wq = jax.random.normal(k_wq, (n_tok, d_msa), dtype=jnp.float32)
    return msa, seq, w, b, wq


if __name__ == "__main__":
    d_init = 22 + 1 + 2          # 25
    d_msa = 32
    n_tok = 22
    key = jax.random.PRNGKey(0)
    k1, k2 = jax.random.split(key)

    # Main case: L % 8 == 0 -> flattened lane-dense fast path.
    B, N, L = 2, 4, 8
    msa, seq, w, b, wq = _make_inputs(k1, B, N, L, d_init, d_msa, n_tok)
    out = extra_emb_forward(msa, seq, w, b, wq)
    jax.block_until_ready(out)
    ref = _reference(msa, seq, w, b, wq)
    assert out.shape == (B, N, L, d_msa)
    assert jnp.allclose(out, ref, atol=1e-4, rtol=1e-4)

    # Secondary case: B == 1 (megacore >=2 grid points), L % 8 != 0 (3-D fallback),
    # N prime-ish (tn | N rounding).
    B2, N2, L2 = 1, 5, 6
    msa2, seq2, w2, b2, wq2 = _make_inputs(k2, B2, N2, L2, d_init, d_msa, n_tok)
    out2 = extra_emb_forward(msa2, seq2, w2, b2, wq2)
    jax.block_until_ready(out2)
    ref2 = _reference(msa2, seq2, w2, b2, wq2)
    assert out2.shape == (B2, N2, L2, d_msa)
    assert jnp.allclose(out2, ref2, atol=1e-4, rtol=1e-4)

    print("KERNEL_OK")
</pallas_src>

<mosaic_0001>
module attributes {stable_mosaic.version = 11 : i64} {
  func.func @_extra_emb_flat_kernel(%arg0: i32, %arg1: i32, %arg2: memref<1x32x25xf32, #tpu.memory_space<vmem>>, %arg3: memref<1x8x32xf32, #tpu.memory_space<vmem>>, %arg4: memref<25x32xf32, #tpu.memory_space<vmem>>, %arg5: memref<1x32x32xf32, #tpu.memory_space<vmem>>) attributes {dimension_semantics = [#tpu.dimension_semantics<parallel>, #tpu.dimension_semantics<parallel>], iteration_bounds = array<i64: 2, 1>, scalar_prefetch = 0 : i64, scratch_operands = 0 : i64, tpu.core_type = #tpu.core_type<tc>, window_params = [{transform_indices = @transform_0, window_bounds = array<i64: 1, 32, 25>}, {transform_indices = @transform_1, window_bounds = array<i64: 1, 8, 32>}, {pipeline_mode = #tpu.pipeline_mode<synchronous>, transform_indices = @transform_2, window_bounds = array<i64: 25, 32>}, {transform_indices = @transform_3, window_bounds = array<i64: 1, 32, 32>}]} {
    %c0 = arith.constant 0 : index
    %c0_0 = arith.constant 0 : index
    %c0_1 = arith.constant 0 : index
    %0 = vector.load %arg2[%c0, %c0_0, %c0_1] : memref<1x32x25xf32, #tpu.memory_space<vmem>>, vector<1x32x25xf32>
    %1 = vector.shape_cast %0 : vector<1x32x25xf32> to vector<32x25xf32>
    %c0_2 = arith.constant 0 : index
    %c0_3 = arith.constant 0 : index
    %2 = vector.load %arg4[%c0_2, %c0_3] : memref<25x32xf32, #tpu.memory_space<vmem>>, vector<25x32xf32>
    %cst = arith.constant dense<0.000000e+00> : vector<32x32xf32>
    %3 = tpu.matmul %1, %2, %cst {dimension_numbers = #tpu.dot_dimension_numbers<[1], [0], [0], [1], [0, 0, 1, 1], [], []>} : vector<32x25xf32>, vector<25x32xf32>, vector<32x32xf32> -> vector<32x32xf32>
    %4 = vector.shape_cast %3 : vector<32x32xf32> to vector<4x8x32xf32>
    %c0_4 = arith.constant 0 : index
    %c0_5 = arith.constant 0 : index
    %c0_6 = arith.constant 0 : index
    %5 = vector.load %arg3[%c0_4, %c0_5, %c0_6] : memref<1x8x32xf32, #tpu.memory_space<vmem>>, vector<1x8x32xf32>
    %6 = vector.broadcast %5 : vector<1x8x32xf32> to vector<4x8x32xf32>
    %7 = arith.addf %4, %6 : vector<4x8x32xf32>
    %8 = vector.shape_cast %7 : vector<4x8x32xf32> to vector<32x32xf32>
    %c0_7 = arith.constant 0 : index
    %c0_8 = arith.constant 0 : index
    %c0_9 = arith.constant 0 : index
    %9 = vector.load %arg5[%c0_7, %c0_8, %c0_9] : memref<1x32x32xf32, #tpu.memory_space<vmem>>, vector<1x32x32xf32>
    %10 = vector.shape_cast %9 : vector<1x32x32xf32> to vector<32x32xf32>
    %11 = vector.shape_cast %8 : vector<32x32xf32> to vector<1x32x32xf32>
    tpu.vector_store %arg5[%c0_7, %c0_8, %c0_9], %11 {strides = array<i32>} : memref<1x32x32xf32, #tpu.memory_space<vmem>>, vector<1x32x32xf32>,
    return
  }
  func.func @transform_0(%arg0: i32, %arg1: i32) -> (i32, i32, i32) {
    %c0_i32 = arith.constant 0 : i32
    %c0_i32_0 = arith.constant 0 : i32
    return %arg0, %arg1, %c0_i32 : i32, i32, i32
  }
  func.func @transform_1(%arg0: i32, %arg1: i32) -> (i32, i32, i32) {
    %c0_i32 = arith.constant 0 : i32
    %c0_i32_0 = arith.constant 0 : i32
    %c0_i32_1 = arith.constant 0 : i32
    return %arg0, %c0_i32, %c0_i32_0 : i32, i32, i32
  }
  func.func @transform_2(%arg0: i32, %arg1: i32) -> (i32, i32) {
    %c0_i32 = arith.constant 0 : i32
    %c0_i32_0 = arith.constant 0 : i32
    %c0_i32_1 = arith.constant 0 : i32
    return %c0_i32, %c0_i32_0 : i32, i32
  }
  func.func @transform_3(%arg0: i32, %arg1: i32) -> (i32, i32, i32) {
    %c0_i32 = arith.constant 0 : i32
    %c0_i32_0 = arith.constant 0 : i32
    return %arg0, %arg1, %c0_i32 : i32, i32, i32
  }
}

</mosaic_0001>

<llo_original>
// kernel: tpu_custom_call.1
$region0: #{tpu_custom_call.1}
  #allocation0 [shape = 'u32[]', space=smem, size = 0x4, offset = 0x4, fixed_abs, tag = 'smem constant byte address 0x4 - core index']
  #allocation1 [shape = 'u32[144,128]{1,0:T(1,128)}', space=vmem, size = 0x12000, scoped, tag = 'internal scratch']
  %s0 = inlined_call_operand.vmem [shape: f32[2,32,25], index: 0, kind: input, shape index: {}]
  %s1 = inlined_call_operand.vmem [shape: f32[2,8,32], index: 1, kind: input, shape index: {}]
  %s2 = inlined_call_operand.vmem [shape: f32[25,32], index: 2, kind: input, shape index: {}]
  %s3 = inlined_call_operand.hbm [shape: f32[2,32,32], index: 3, kind: output, shape index: {}]
  %s4 = sld [smem:[#allocation0]]
  $region45: #{tpu_custom_call.1} parent=0
    _
  %s6 = ssub.s32 1, %s4
  %s7 = scalar_select 0, %s6, %s4
  $region1: #{tpu_custom_call.1} parent=0
    #allocation2 [shape = 'u8[32768]{0}', space=vmem, size = 0x8000, scoped, tag = 'output window, operand 0']
    #allocation3 [shape = 's32[2]{0}', space=sflag, size = 0x8, scoped, tag = 'scoped memory for tpu_custom_call.1']
    %8 = vsyncpa [#allocation3], 0
    %s9 = scalar_lea.sflag [#allocation3], 1
    %10 = vsyncpa %s9, 0
    loop: start=0, step=1, limit=4
    $region2: #{tpu_custom_call.1} parent=1 // loop_pre_header
      _
    $region3: #{tpu_custom_call.1} parent=1 // loop_header
      %s12 = sphi 0, %s16
      %p13 = scmp.ge.s32.totalorder %s12, 4
      %s19 = sphi 0, %s31
      %s20 = sphi 0, %s27
      %s21 = sphi 0, %s19
      %s22 = sphi 0, %s20
      %s23 = sphi 0, %s21
      %s24 = sphi 0, %s22
      %s36 = sphi 0, %s38
      %s39 = sphi 0, %s36
      %s40 = sphi 0, %s39
      %s56 = sphi 0, %s40
      %s62 = sphi 0, %s64
      %s65 = sphi 0, %s62
      %s66 = sphi 0, %s65
      %s82 = sphi 0, %s66
      %s86 = sphi 0, %s86
      %s88 = sphi 0, %s86
      %s89 = sphi 0, %s88
      %s103 = sphi 0, %s89
      %s111 = sphi 0, %s113
      %s114 = sphi 0, %s111
      %s115 = sphi 0, %s114
      %s131 = sphi 0, %s115
    $region4: #{tpu_custom_call.1} parent=1 // loop_header_branch
      %15 = sbr.rel (%p13) target = $region8
    $region5: #{tpu_custom_call.1} parent=1 // loop_body
      %s17 = ssub.s32 %s12, 1
      %s18 = ssub.s32 %s12, 2
      %s25 = sadd.s32 1, %s20
      %p26 = scmp.ge.s32.totalorder %s25, 1
      %s27 = scalar_select %p26, 0, %s25
      %s28 = sadd.s32 1, %s19
      %s29 = scalar_select %p26, %s28, %s19
      %p30 = scmp.ge.s32.totalorder %s29, 2
      %s31 = scalar_select %p30, 0, %s29
      %s32 = ssub.s32 %s19, %s31
      %s33 = ssub.s32 %s20, %s27
      %s34 = sor.u32 %s32, %s33
      %p35 = scmp.eq.s32.totalorder %s34, 0
      %s37 = sadd.s32 %s36, 1
      %s38 = scalar_select %p35, %s36, %s37
      %p41 = pneg %p35
      %p42 = scmp.eq.s32.totalorder %s12, 1
      %p43 = por %p41, %p42
      %p44 = scmp.ne.s32.totalorder %s36, %s39
      %p45 = scmp.eq.s32.totalorder %s12, 0
      %p46 = por %p44, %p45
      %p47 = scmp.ne.s32.totalorder %s36, %s39
      %p48 = scmp.eq.s32.totalorder %s17, 1
      %p49 = por %p47, %p48
      %p50 = scmp.ne.s32.totalorder %s39, %s40
      %p51 = scmp.eq.s32.totalorder %s17, 0
      %p52 = por %p50, %p51
      %p53 = scmp.ne.s32.totalorder %s39, %s40
      %p54 = scmp.eq.s32.totalorder %s18, 1
      %p55 = por %p53, %p54
      %p57 = scmp.ne.s32.totalorder %s40, %s56
      %p58 = scmp.eq.s32.totalorder %s18, 0
      %p59 = por %p57, %p58
      %s60 = ssub.s32 %s19, %s31
      %p61 = scmp.eq.s32.totalorder %s60, 0
      %s63 = sadd.s32 %s62, 1
      %s64 = scalar_select %p61, %s62, %s63
      %p67 = pneg %p61
      %p68 = scmp.eq.s32.totalorder %s12, 1
      %p69 = por %p67, %p68
      %p70 = scmp.ne.s32.totalorder %s62, %s65
      %p71 = scmp.eq.s32.totalorder %s12, 0
      %p72 = por %p70, %p71
      %p73 = scmp.ne.s32.totalorder %s62, %s65
      %p74 = scmp.eq.s32.totalorder %s17, 1
      %p75 = por %p73, %p74
      %p76 = scmp.ne.s32.totalorder %s65, %s66
      %p77 = scmp.eq.s32.totalorder %s17, 0
      %p78 = por %p76, %p77
      %p79 = scmp.ne.s32.totalorder %s65, %s66
      %p80 = scmp.eq.s32.totalorder %s18, 1
      %p81 = por %p79, %p80
      %p83 = scmp.ne.s32.totalorder %s66, %s82
      %p84 = scmp.eq.s32.totalorder %s18, 0
      %p85 = por %p83, %p84
      %s87 = sadd.s32 %s86, 1
      %p90 = scmp.eq.s32.totalorder %s12, 1
      %p91 = scmp.ne.s32.totalorder %s86, %s88
      %p92 = scmp.eq.s32.totalorder %s12, 0
      %p93 = por %p91, %p92
      %p94 = scmp.ne.s32.totalorder %s86, %s88
      %p95 = scmp.eq.s32.totalorder %s17, 1
      %p96 = por %p94, %p95
      %p97 = scmp.ne.s32.totalorder %s88, %s89
      %p98 = scmp.eq.s32.totalorder %s17, 0
      %p99 = por %p97, %p98
      %p100 = scmp.ne.s32.totalorder %s88, %s89
      %p101 = scmp.eq.s32.totalorder %s18, 1
      %p102 = por %p100, %p101
      %p104 = scmp.ne.s32.totalorder %s89, %s103
      %p105 = scmp.eq.s32.totalorder %s18, 0
      %p106 = por %p104, %p105
      %s107 = ssub.s32 %s19, %s31
      %s108 = ssub.s32 %s20, %s27
      %s109 = sor.u32 %s107, %s108
      %p110 = scmp.eq.s32.totalorder %s109, 0
      %s112 = sadd.s32 %s111, 1
      %s113 = scalar_select %p110, %s111, %s112
      %p116 = pneg %p110
      %p117 = scmp.eq.s32.totalorder %s12, 1
      %p118 = por %p116, %p117
      %p119 = scmp.ne.s32.totalorder %s111, %s114
      %p120 = scmp.eq.s32.totalorder %s12, 0
      %p121 = por %p119, %p120
      %p122 = scmp.ne.s32.totalorder %s111, %s114
      %p123 = scmp.eq.s32.totalorder %s17, 1
      %p124 = por %p122, %p123
      %p125 = scmp.ne.s32.totalorder %s114, %s115
      %p126 = scmp.eq.s32.totalorder %s17, 0
      %p127 = por %p125, %p126
      %p128 = scmp.ne.s32.totalorder %s114, %s115
      %p129 = scmp.eq.s32.totalorder %s18, 1
      %p130 = por %p128, %p129
      %p132 = scmp.ne.s32.totalorder %s115, %s131
      %p133 = scmp.eq.s32.totalorder %s18, 0
      %p134 = por %p132, %p133
      %p135 = scmp.le.s32.totalorder 1, %s12
      %p136 = scmp.lt.s32.totalorder %s12, 3
      %p137 = pnand %p135, %p136
      %p138 = pneg %p137
      // Predicated region
      $region9: #{tpu_custom_call.1} parent=5 // pred_check
        _
      $region10: #{tpu_custom_call.1} parent=5 // pred_check_branch
        %140 = sbr.rel (%p137) target = $region12
      $region11: #{tpu_custom_call.1} parent=5 // pred_region
        %s141 = ssub.s32 %s12, 1
        // Predicated region
        $region13: #{tpu_custom_call.1} parent=11 // pred_check
          %p142 = pneg %p99
        $region14: #{tpu_custom_call.1} parent=11 // pred_check_branch
          %144 = sbr.rel (%p142) target = $region16
        $region15: #{tpu_custom_call.1} parent=11 // pred_region
          _
        $region16: #{tpu_custom_call.1} parent=11 // pred_fallthru
          _
      $region12: #{tpu_custom_call.1} parent=5 // pred_fallthru
        _
      %p145 = scmp.lt.s32.totalorder %s12, 2
      // Predicated region
      $region17: #{tpu_custom_call.1} parent=5 // pred_check
        %p146 = pneg %p145
      $region18: #{tpu_custom_call.1} parent=5 // pred_check_branch
        %148 = sbr.rel (%p146) target = $region20
      $region19: #{tpu_custom_call.1} parent=5 // pred_region
        // Predicated region
        $region21: #{tpu_custom_call.1} parent=19 // pred_check
          %p149 = pneg %p46
        $region22: #{tpu_custom_call.1} parent=19 // pred_check_branch
          %151 = sbr.rel (%p149) target = $region24
        $region23: #{tpu_custom_call.1} parent=19 // pred_region
          %s152 = smul.u32 4, %s20
          %p153 = scmp.lt.s32.totalorder %s19, 1
          %s154 = scalar_select %p153, %s19, 1
          %p155 = scmp.lt.s32.totalorder %s152, 3
          %s156 = scalar_select %p155, %s152, 3
          %s157 = smul.addr %s154, 4
          %s158 = sadd.s32 %s156, %s157
          %s159 = smul.addr %s158, 8
          %s160 = scalar_lea.vmem %s0, %s159
          %s161 = smul.u32 4, %s20
        $region24: #{tpu_custom_call.1} parent=19 // pred_fallthru
          _
        // Predicated region
        $region25: #{tpu_custom_call.1} parent=19 // pred_check
          %p162 = pneg %p72
        $region26: #{tpu_custom_call.1} parent=19 // pred_check_branch
          %164 = sbr.rel (%p162) target = $region28
        $region27: #{tpu_custom_call.1} parent=19 // pred_region
          %p165 = scmp.lt.s32.totalorder %s19, 1
          %s166 = scalar_select %p165, %s19, 1
          %s167 = smul.addr %s166, 8
          %s168 = scalar_lea.vmem %s1, %s167
        $region28: #{tpu_custom_call.1} parent=19 // pred_fallthru
          _
      $region20: #{tpu_custom_call.1} parent=5 // pred_fallthru
        _
      %p169 = scmp.le.s32.totalorder 1, %s12
      %p170 = scmp.lt.s32.totalorder %s12, 3
      %p171 = pnand %p169, %p170
      %p172 = pneg %p171
      // Predicated region
      $region29: #{tpu_custom_call.1} parent=5 // pred_check
        _
      $region30: #{tpu_custom_call.1} parent=5 // pred_check_branch
        %174 = sbr.rel (%p171) target = $region32
      $region31: #{tpu_custom_call.1} parent=5 // pred_region
        %s175 = ssub.s32 %s12, 1
        %s176 = smul.u32 4, %s22
        %p177 = scmp.lt.s32.totalorder %s21, 1
        %s178 = scalar_select %p177, %s21, 1
        %p179 = scmp.lt.s32.totalorder %s176, 3
        %s180 = scalar_select %p179, %s176, 3
        %s181 = smul.addr %s178, 4
        %s182 = sadd.s32 %s180, %s181
        %s183 = smul.addr %s182, 8
        %s184 = scalar_lea.vmem %s0, %s183
        %p185 = pneg %p52
        %p186 = pneg %p49
        %p187 = scmp.lt.s32.totalorder %s21, 1
        %s188 = scalar_select %p187, %s21, 1
        %s189 = smul.addr %s188, 8
        %s190 = scalar_lea.vmem %s1, %s189
        %p191 = pneg %p78
        %p192 = pneg %p75
        %p193 = pneg %p99
        %p194 = pneg %p96
        %p195 = pneg %p127
        %p196 = pneg %p124
        %s197 = sand.u32 %s114, 1
        %s198 = scalar_lea.sflag [#allocation3], %s197
        %s199 = sand.u32 %s114, 1
        %s200 = smul.addr %s199, 32
        %s201 = scalar_lea.vmem [#allocation2], %s200
        %s202 = smul.u32 4, %s22
        %p203 = scmp.lt.s32.totalorder %s21, 1
        %s204 = scalar_select %p203, %s21, 1
        %p205 = scmp.lt.s32.totalorder %s202, 3
        %s206 = scalar_select %p205, %s202, 3
        %s207 = smul.addr %s204, 4
        %s208 = sadd.s32 %s206, %s207
        %s209 = smul.addr %s208, 8
        %s210 = scalar_lea.vmem %s0, %s209
        %s211 = smul.u32 4, %s22
        %p212 = scmp.lt.s32.totalorder %s21, 1
        %s213 = scalar_select %p212, %s21, 1
        %s214 = smul.addr %s213, 8
        %s215 = scalar_lea.vmem %s1, %s214
        %s216 = smul.u32 4, %s22
        %v217 = vld [vmem:[%s210] sm:$0xff]
        %v218 = vld [vmem:[%s210 + $0x8] sm:$0xff]
        %v219 = vld [vmem:[%s210 + $0x10] sm:$0xff]
        %v220 = vld [vmem:[%s210 + $0x18] sm:$0xff]
        %v221 = vld [vmem:[%s2] sm:$0xff]
        %v222 = vld [vmem:[%s2 + $0x8] sm:$0xff]
        %v223 = vld [vmem:[%s2 + $0x10] sm:$0xff]
        %v224 = vld [vmem:[%s2 + $0x18] sm:$0x1]
        %vm225 = vcmask 203776
        %v227 = vsel %vm225, %v217, 0
        %v230 = vsel %vm225, %v218, 0
        %v233 = vsel %vm225, %v219, 0
        %v236 = vsel %vm225, %v220, 0
        %vm238 = vcmask 1040384
        %v240 = vsel %vm238, %v224, 0
        %242 = vmatprep.subr.mxu0 0.0
        %243 = vmatpush1.msra.mxu0 %v221
        %244 = vmatprep.subr.mxu0 0.0
        %245 = vmatpush1.msra.mxu0 %v222
        %246 = vmatprep.subr.mxu0 0.0
        %247 = vmatpush1.msra.mxu0 %v223
        %248 = vmatprep.subr.mxu0 0.0
        %249 = vmatpush1.msra.mxu0 %v240
        %250 = vmatprep.subr.mxu0 0.0
        %251 = vmatpush1.msra.mxu0 0.0
        %252 = vmatprep.subr.mxu0 0.0
        %253 = vmatpush1.msra.mxu0 0.0
        %254 = vmatprep.subr.mxu0 0.0
        %255 = vmatpush1.msra.mxu0 0.0
        %256 = vmatprep.subr.mxu0 0.0
        %257 = vmatpush1.msra.mxu0 0.0
        %258 = vmatprep.subr.mxu0 0.0
        %259 = vmatpush1.msra.mxu0 0.0
        %260 = vmatprep.subr.mxu0 0.0
        %261 = vmatpush1.msra.mxu0 0.0
        %262 = vmatprep.subr.mxu0 0.0
        %263 = vmatpush1.msra.mxu0 0.0
        %264 = vmatprep.subr.mxu0 0.0
        %265 = vmatpush1.msra.mxu0 0.0
        %266 = vmatprep.subr.mxu0 0.0
        %267 = vmatpush1.msra.mxu0 0.0
        %268 = vmatprep.subr.mxu0 0.0
        %269 = vmatpush1.msra.mxu0 0.0
        %270 = vmatprep.subr.mxu0 0.0
        %271 = vmatpush1.msra.mxu0 0.0
        %272 = vmatprep.subr.mxu0 0.0
        %273 = vmatpush1.msra.mxu0 0.0
        %274 = vmatprep.subr.mxu0 0.0
        %275 = vmatpush1.msra.mxu0 0.0
        %276 = vmatprep.subr.mxu0 0.0
        %277 = vmatpush1.msra.mxu0 0.0
        %278 = vmatprep.subr.mxu0 0.0
        %279 = vmatpush1.msra.mxu0 0.0
        %280 = vmatprep.subr.mxu0 0.0
        %281 = vmatpush1.msra.mxu0 0.0
        %282 = vmatprep.subr.mxu0 0.0
        %283 = vmatpush1.msra.mxu0 0.0
        %284 = vmatprep.subr.mxu0 0.0
        %285 = vmatpush1.msra.mxu0 0.0
        %286 = vmatprep.subr.mxu0 0.0
        %287 = vmatpush1.msra.mxu0 0.0
        %288 = vmatprep.subr.mxu0 0.0
        %289 = vmatpush1.msra.mxu0 0.0
        %290 = vmatprep.subr.mxu0 0.0
        %291 = vmatpush1.msra.mxu0 0.0
        %292 = vmatprep.subr.mxu0 0.0
        %293 = vmatpush1.msra.mxu0 0.0
        %294 = vmatprep.subr.mxu0 0.0
        %295 = vmatpush1.msra.mxu0 0.0
        %296 = vmatprep.subr.mxu0 0.0
        %297 = vmatpush1.msra.mxu0 0.0
        %298 = vmatprep.subr.mxu0 0.0
        %299 = vmatpush1.msra.mxu0 0.0
        %300 = vmatprep.subr.mxu0 0.0
        %301 = vmatpush1.msra.mxu0 0.0
        %302 = vmatprep.subr.mxu0 0.0
        %303 = vmatpush1.msra.mxu0 0.0
        %304 = vmatprep.subr.mxu0 0.0
        %305 = vmatpush1.msra.mxu0 0.0
        %306 = vmatprep.mubr.f32.mxu0 0.0
        %307 = vmatmul.mubr.f32.gmra.mrb[0].mxu0 %v227
        %v308 = vpop.f32.mrb[0].mxu0
        %v309 = vadd.f32 0.0, %v308
        %v310 = vpop.f32.mrb[0].mxu0
        %311 = vmatprep.mubr.f32.mxu0 0.0
        %312 = vmatmul.mubr.f32.gmra.mrb[0].mxu0 %v230
        %v313 = vpop.f32.mrb[0].mxu0
        %v314 = vadd.f32 0.0, %v313
        %v315 = vpop.f32.mrb[0].mxu0
        %316 = vmatprep.mubr.f32.mxu0 0.0
        %317 = vmatmul.mubr.f32.gmra.mrb[0].mxu0 %v233
        %v318 = vpop.f32.mrb[0].mxu0
        %v319 = vadd.f32 0.0, %v318
        %v320 = vpop.f32.mrb[0].mxu0
        %321 = vmatprep.mubr.f32.mxu0 0.0
        %322 = vmatmul.mubr.f32.gmra.mrb[0].mxu0 %v236
        %v323 = vpop.f32.mrb[0].mxu0
        %v324 = vadd.f32 0.0, %v323
        %v325 = vpop.f32.mrb[0].mxu0
        %326 = vdwg.mxu0
        %v327 = vld [vmem:[%s215] sm:$0xff]
        %v328 = vadd.f32 %v309, %v327
        %v329 = vadd.f32 %v314, %v327
        %v330 = vadd.f32 %v319, %v327
        %v331 = vadd.f32 %v324, %v327
        %vm332 = vcmask 261120
        %333 = vst.msk [vmem:[%s201] sm:$0xff] %vm332, %v328
        %334 = vst.msk [vmem:[%s201 + $0x8] sm:$0xff] %vm332, %v329
        %335 = vst.msk [vmem:[%s201 + $0x10] sm:$0xff] %vm332, %v330
        %336 = vst.msk [vmem:[%s201 + $0x18] sm:$0xff] %vm332, %v331
        %s337 = sand.u32 %s114, 1
        %s338 = scalar_lea.sflag [#allocation3], %s337
        %s339 = sand.u32 %s114, 1
        %s340 = smul.addr %s339, 32
        %s341 = scalar_lea.vmem [#allocation2], %s340
        // Predicated region
        $region33: #{tpu_custom_call.1} parent=31 // pred_check
          %p342 = pneg %p124
        $region34: #{tpu_custom_call.1} parent=31 // pred_check_branch
          %344 = sbr.rel (%p342) target = $region36
        $region35: #{tpu_custom_call.1} parent=31 // pred_region
          %s345 = smul.u32 4, %s22
          %s347 = ssub.s32 512, 512
          %348 = vsyncadd %s338, %s347
          %s349 = smul.addr %s21, 4
          %s350 = sadd.s32 %s345, %s349
          %s351 = smul.addr %s350, 128
          %s352 = scalar_lea.hbm %s3, %s351
          %s353 = sshll.u32 %s341, 4
          %s354 = int_to_ptr.vmem [resolvable:$true] %s353
          %359 = dma.vmem_to_hbm [thread:$0]  %s354, 512, %s352, %s338, 128, 128, 8
        $region36: #{tpu_custom_call.1} parent=31 // pred_fallthru
          _
      $region32: #{tpu_custom_call.1} parent=5 // pred_fallthru
        _
      %p360 = scmp.le.s32.totalorder 2, %s12
      // Predicated region
      $region37: #{tpu_custom_call.1} parent=5 // pred_check
        %p361 = pneg %p360
      $region38: #{tpu_custom_call.1} parent=5 // pred_check_branch
        %363 = sbr.rel (%p361) target = $region40
      $region39: #{tpu_custom_call.1} parent=5 // pred_region
        %s364 = ssub.s32 %s12, 2
        // Predicated region
        $region41: #{tpu_custom_call.1} parent=39 // pred_check
          %p365 = pneg %p130
        $region42: #{tpu_custom_call.1} parent=39 // pred_check_branch
          %367 = sbr.rel (%p365) target = $region44
        $region43: #{tpu_custom_call.1} parent=39 // pred_region
          %s368 = sand.u32 %s115, 1
          %s369 = scalar_lea.sflag [#allocation3], %s368
          %s370 = sand.u32 %s115, 1
          %s371 = smul.addr %s370, 32
          %s372 = scalar_lea.vmem [#allocation2], %s371
          %373 = dma.done %s369, 512
        $region44: #{tpu_custom_call.1} parent=39 // pred_fallthru
          _
      $region40: #{tpu_custom_call.1} parent=5 // pred_fallthru
        _
    $region6: #{tpu_custom_call.1} parent=1 // loop_footer
      %s16 = sadd.s32 1, %s12
    $region7: #{tpu_custom_call.1} parent=1 // loop_footer_branch
      %11 = sbr.rel target = $region3
    $region8: #{tpu_custom_call.1} parent=1 // loop_exit
      _
    %374 = vsyncpa [#allocation3], 1
    %s375 = scalar_lea.sflag [#allocation3], 1
    %376 = vsyncpa %s375, 1

</llo_original>
